<compile_context>
chip_gen: v7x
topology: tpu7x:2x2x1
jax: 0.10.0
libtpu: 0.0.40
codegen_flags: <defaults>
</compile_context>

<pallas_src>
import math
import functools

import jax
import jax.numpy as jnp
from jax import lax
from jax.experimental import pallas as pl
from jax.experimental.pallas import tpu as pltpu


def _round_up(x, m):
    return ((x + m - 1) // m) * m


def _pick_class_tile(n_pad, tn_max):
    """Largest multiple of 128 that divides n_pad and is <= tn_max."""
    best = 128
    t = 128
    while t <= min(tn_max, n_pad):
        if n_pad % t == 0:
            best = t
        t += 128
    return best


def _tile_cosine(x, w, xn, wn, eps, approx_recip):
    """cosine tile: (TB,D) x (TN,D) -> (TB,TN); denominator via VPU broadcast."""
    # single MXU contraction, no explicit transpose
    ip = lax.dot_general(x, w, (((1,), (1,)), ((), ())),
                         preferred_element_type=jnp.float32)           # (TB, TN)
    denom = jnp.maximum(xn * wn, eps)                                  # (TB,1)*(1,TN)
    if approx_recip:
        return ip * pl.reciprocal(denom, approx=True)                  # EUP slot
    return ip / denom


def _cosine_kernel(x_ref, xn_ref, w_ref, wn_ref, cos_ref, *, eps, approx_recip):
    # label=None path: cosine only, no margin epilogue, single output.
    cos_ref[...] = _tile_cosine(x_ref[...], w_ref[...], xn_ref[...], wn_ref[...],
                                eps, approx_recip)


def _margin_tile(x_ref, xn_ref, w_ref, wn_ref, label_ref, *, s, sm, eps, tn,
                 approx_recip):
    i = pl.program_id(0)  # class-tile index (OUTER / slow grid axis after reorder)
    cosine = _tile_cosine(x_ref[...], w_ref[...], xn_ref[...], wn_ref[...],
                          eps, approx_recip)
    # one_hot.scatter_(1, label, 1): shift the tiny (TB,1) label instead of the
    # full-tile iota, and fold s*m so the epilogue is compare + select + 1 mul.
    local_label = label_ref[...] - i * tn                              # (TB, 1)
    col = lax.broadcasted_iota(jnp.int32, cosine.shape, 1)             # 0..TN-1
    scaled = s * cosine
    out = jnp.where(col == local_label, scaled - sm, scaled)
    return out, cosine


def _margin_kernel(x_ref, xn_ref, w_ref, wn_ref, label_ref, out_ref, cos_ref, **kw):
    out, cosine = _margin_tile(x_ref, xn_ref, w_ref, wn_ref, label_ref, **kw)
    out_ref[...] = out
    cos_ref[...] = cosine


def _margin_kernel_nocos(x_ref, xn_ref, w_ref, wn_ref, label_ref, out_ref, **kw):
    out, _ = _margin_tile(x_ref, xn_ref, w_ref, wn_ref, label_ref, **kw)
    out_ref[...] = out


class MarginCosineProductPallas:
    """Pallas-TPU implementation of MarginCosineProduct.forward."""

    def __init__(self, in_features, out_features, s=30.0, m=0.4, key=None,
                 tb_max=256, tn_max=512, use_bf16_matmul=False,
                 approx_recip=False, vmem_limit_bytes=None):
        self.in_features = in_features
        self.out_features = out_features
        self.s = float(s)
        self.m = float(m)
        self.eps = 1e-8
        self.approx_recip = approx_recip
        self._tb_max = tb_max
        self._vmem_limit_bytes = vmem_limit_bytes

        # deterministic xavier_uniform_ for weight of shape (out_features, in_features)
        if key is None:
            key = jax.random.PRNGKey(0)
        bound = math.sqrt(6.0 / (in_features + out_features))
        self.weight = jax.random.uniform(
            key, (out_features, in_features), jnp.float32,
            minval=-bound, maxval=bound)

        # ---- static per-parameter precompute (done ONCE, not per call) -------
        # pad classes only to a multiple of 128 (lane-dense, minimal waste) and
        # pick TN as the largest 128-multiple divisor of the padded size.
        self._n_pad = _round_up(out_features, 128)
        self._tn = _pick_class_tile(self._n_pad, tn_max)
        pad_n = self._n_pad - out_features
        w_padded = jnp.pad(self.weight, ((0, pad_n), (0, 0))) if pad_n else self.weight
        # weight row norms from f32 weights, once
        self._w_norm = jnp.sqrt(jnp.sum(w_padded * w_padded, axis=1,
                                        keepdims=True)).reshape(1, -1)   # (1, N_pad)
        # optional one-time bf16 weight storage (halves the dominant HBM stream)
        self._mm_dtype = jnp.bfloat16 if use_bf16_matmul else jnp.float32
        self._w_padded = w_padded.astype(self._mm_dtype)                 # (N_pad, D)

    def __call__(self, x, label=None, return_cosine=True):
        B, D = x.shape
        assert D == self.in_features
        N = self.out_features
        tn, n_pad = self._tn, self._n_pad

        tb = min(self._tb_max, _round_up(B, 8))
        b_pad = _round_up(B, tb)

        # per-row x norms hoisted out of the kernel (computed once, f32)
        xn = jnp.sqrt(jnp.sum(x * x, axis=1, keepdims=True))            # (B, 1)
        if b_pad != B:
            x = jnp.pad(x, ((0, b_pad - B), (0, 0)))
            xn = jnp.pad(xn, ((0, b_pad - B), (0, 0)))
        x_mm = x.astype(self._mm_dtype)

        # classes OUTER (slow), batch INNER (fast): W tile stays resident,
        # only the small x tile / xn / label stream per inner step.
        grid = (n_pad // tn, b_pad // tb)
        cparams = pltpu.CompilerParams(
            dimension_semantics=("parallel", "parallel"),
            vmem_limit_bytes=self._vmem_limit_bytes)

        x_spec = pl.BlockSpec((tb, D), lambda i, j: (j, 0))
        xn_spec = pl.BlockSpec((tb, 1), lambda i, j: (j, 0))
        w_spec = pl.BlockSpec((tn, D), lambda i, j: (i, 0))
        wn_spec = pl.BlockSpec((1, tn), lambda i, j: (0, i))
        o_spec = pl.BlockSpec((tb, tn), lambda i, j: (j, i))

        if label is None:
            cos = pl.pallas_call(
                functools.partial(_cosine_kernel, eps=self.eps,
                                  approx_recip=self.approx_recip),
                out_shape=jax.ShapeDtypeStruct((b_pad, n_pad), jnp.float32),
                grid=grid,
                in_specs=[x_spec, xn_spec, w_spec, wn_spec],
                out_specs=o_spec,
                compiler_params=cparams,
            )(x_mm, xn, self._w_padded, self._w_norm)
            return cos[:B, :N]

        lbl = jnp.asarray(label).reshape(-1, 1).astype(jnp.int32)
        if b_pad != B:
            lbl = jnp.pad(lbl, ((0, b_pad - B), (0, 0)), constant_values=-1)
        lbl_spec = pl.BlockSpec((tb, 1), lambda i, j: (j, 0))

        kw = dict(s=self.s, sm=self.s * self.m, eps=self.eps, tn=tn,
                  approx_recip=self.approx_recip)

        if return_cosine:
            out, cos = pl.pallas_call(
                functools.partial(_margin_kernel, **kw),
                out_shape=(jax.ShapeDtypeStruct((b_pad, n_pad), jnp.float32),
                           jax.ShapeDtypeStruct((b_pad, n_pad), jnp.float32)),
                grid=grid,
                in_specs=[x_spec, xn_spec, w_spec, wn_spec, lbl_spec],
                out_specs=(o_spec, o_spec),
                compiler_params=cparams,
            )(x_mm, xn, self._w_padded, self._w_norm, lbl)
            return out[:B, :N], cos[:B, :N]

        out = pl.pallas_call(
            functools.partial(_margin_kernel_nocos, **kw),
            out_shape=jax.ShapeDtypeStruct((b_pad, n_pad), jnp.float32),
            grid=grid,
            in_specs=[x_spec, xn_spec, w_spec, wn_spec, lbl_spec],
            out_specs=o_spec,
            compiler_params=cparams,
        )(x_mm, xn, self._w_padded, self._w_norm, lbl)
        return out[:B, :N]


def _reference(module, x, label):
    """Pure-JAX reference mirroring the PyTorch forward (f32 weights)."""
    W = module.weight
    ip = x @ W.T
    w1 = jnp.linalg.norm(x, axis=1)
    w2 = jnp.linalg.norm(W, axis=1)
    cosine = ip / jnp.maximum(jnp.outer(w1, w2), 1e-8)
    if label is None:
        return cosine
    one_hot = jax.nn.one_hot(label, module.out_features, dtype=jnp.float32)
    out = module.s * (cosine - one_hot * module.m)
    return out, cosine


if __name__ == "__main__":
    # ---- small primary test: f32-exact path -------------------------------
    B, D, N = 8, 32, 16
    key = jax.random.PRNGKey(0)
    kx, kw_key, kl = jax.random.split(key, 3)

    module = MarginCosineProductPallas(in_features=D, out_features=N,
                                       s=30.0, m=0.4, key=kw_key)
    x = jax.random.normal(kx, (B, D), dtype=jnp.float32)
    label = jax.random.randint(kl, (B,), 0, N, dtype=jnp.int32)

    out, cosine = module(x, label)
    jax.block_until_ready((out, cosine))
    ref_out, ref_cos = _reference(module, x, label)
    assert jnp.allclose(out, ref_out, atol=1e-4, rtol=1e-4)
    assert jnp.allclose(cosine, ref_cos, atol=1e-5, rtol=1e-5)

    # label=None path returns only cosine
    cos_only = module(x, None)
    jax.block_until_ready(cos_only)
    assert jnp.allclose(cos_only, ref_cos, atol=1e-5, rtol=1e-5)

    # single-output (no cosine) margin path
    out_only = module(x, label, return_cosine=False)
    jax.block_until_ready(out_only)
    assert jnp.allclose(out_only, ref_out, atol=1e-4, rtol=1e-4)

    # ---- multi-tile test: exercises class-tile offset logic (i*TN) --------
    B2, D2, N2 = 40, 64, 640          # n_pad=640 -> tn=128 -> 5 class tiles
    k2x, k2w, k2l = jax.random.split(jax.random.PRNGKey(1), 3)
    module2 = MarginCosineProductPallas(in_features=D2, out_features=N2,
                                        s=30.0, m=0.4, key=k2w)
    x2 = jax.random.normal(k2x, (B2, D2), dtype=jnp.float32)
    label2 = jax.random.randint(k2l, (B2,), 0, N2, dtype=jnp.int32)
    out2, cos2 = module2(x2, label2)
    jax.block_until_ready((out2, cos2))
    ref_out2, ref_cos2 = _reference(module2, x2, label2)
    assert jnp.allclose(out2, ref_out2, atol=1e-4, rtol=1e-4)
    assert jnp.allclose(cos2, ref_cos2, atol=1e-5, rtol=1e-5)

    # ---- bf16-weight production path (loose tolerance) --------------------
    module_bf16 = MarginCosineProductPallas(in_features=D, out_features=N,
                                            s=30.0, m=0.4, key=kw_key,
                                            use_bf16_matmul=True)
    out_bf, cos_bf = module_bf16(x, label)
    jax.block_until_ready((out_bf, cos_bf))
    assert jnp.allclose(cos_bf, ref_cos, atol=5e-2)

    print("KERNEL_OK")
</pallas_src>

<mosaic_0001>
module attributes {stable_mosaic.version = 11 : i64} {
  func.func @_margin_kernel(%arg0: i32, %arg1: i32, %arg2: memref<8x32xf32, #tpu.memory_space<vmem>>, %arg3: memref<8x1xf32, #tpu.memory_space<vmem>>, %arg4: memref<128x32xf32, #tpu.memory_space<vmem>>, %arg5: memref<1x128xf32, #tpu.memory_space<vmem>>, %arg6: memref<8x1xi32, #tpu.memory_space<vmem>>, %arg7: memref<8x128xf32, #tpu.memory_space<vmem>>, %arg8: memref<8x128xf32, #tpu.memory_space<vmem>>) attributes {dimension_semantics = [#tpu.dimension_semantics<parallel>, #tpu.dimension_semantics<parallel>], iteration_bounds = array<i64: 1, 1>, scalar_prefetch = 0 : i64, scratch_operands = 0 : i64, tpu.core_type = #tpu.core_type<tc>, window_params = [{transform_indices = @transform_0, window_bounds = array<i64: 8, 32>}, {transform_indices = @transform_1, window_bounds = array<i64: 8, 1>}, {transform_indices = @transform_2, window_bounds = array<i64: 128, 32>}, {transform_indices = @transform_3, window_bounds = array<i64: 1, 128>}, {transform_indices = @transform_4, window_bounds = array<i64: 8, 1>}, {transform_indices = @transform_5, window_bounds = array<i64: 8, 128>}, {transform_indices = @transform_6, window_bounds = array<i64: 8, 128>}]} {
    %c0 = arith.constant 0 : index
    %c0_0 = arith.constant 0 : index
    %0 = vector.load %arg2[%c0, %c0_0] : memref<8x32xf32, #tpu.memory_space<vmem>>, vector<8x32xf32>
    %c0_1 = arith.constant 0 : index
    %c0_2 = arith.constant 0 : index
    %1 = vector.load %arg4[%c0_1, %c0_2] : memref<128x32xf32, #tpu.memory_space<vmem>>, vector<128x32xf32>
    %c0_3 = arith.constant 0 : index
    %c0_4 = arith.constant 0 : index
    %2 = vector.load %arg3[%c0_3, %c0_4] : memref<8x1xf32, #tpu.memory_space<vmem>>, vector<8x1xf32>
    %c0_5 = arith.constant 0 : index
    %c0_6 = arith.constant 0 : index
    %3 = vector.load %arg5[%c0_5, %c0_6] : memref<1x128xf32, #tpu.memory_space<vmem>>, vector<1x128xf32>
    %cst = arith.constant dense<0.000000e+00> : vector<8x128xf32>
    %4 = tpu.matmul %0, %1, %cst {dimension_numbers = #tpu.dot_dimension_numbers<[1], [1], [0], [0], [0, 0, 1, 0], [], []>} : vector<8x32xf32>, vector<128x32xf32>, vector<8x128xf32> -> vector<8x128xf32>
    %5 = vector.broadcast %2 : vector<8x1xf32> to vector<8x128xf32>
    %6 = vector.broadcast %3 : vector<1x128xf32> to vector<8x128xf32>
    %7 = arith.mulf %5, %6 : vector<8x128xf32>
    %cst_7 = arith.constant 9.99999993E-9 : f32
    %8 = vector.broadcast %cst_7 : f32 to vector<8x128xf32>
    %9 = arith.maximumf %7, %8 : vector<8x128xf32>
    %10 = arith.divf %4, %9 : vector<8x128xf32>
    %c0_8 = arith.constant 0 : index
    %c0_9 = arith.constant 0 : index
    %11 = vector.load %arg6[%c0_8, %c0_9] : memref<8x1xi32, #tpu.memory_space<vmem>>, vector<8x1xi32>
    %c128_i32 = arith.constant 128 : i32
    %12 = arith.muli %arg0, %c128_i32 : i32
    %13 = vector.broadcast %12 : i32 to vector<8x1xi32>
    %14 = arith.subi %11, %13 : vector<8x1xi32>
    %15 = tpu.iota {dimensions = array<i32: 1>} : vector<8x128xi32>
    %cst_10 = arith.constant 3.000000e+01 : f32
    %16 = vector.broadcast %cst_10 : f32 to vector<8x128xf32>
    %17 = arith.mulf %16, %10 : vector<8x128xf32>
    %18 = vector.broadcast %14 : vector<8x1xi32> to vector<8x128xi32>
    %19 = arith.cmpi eq, %15, %18 : vector<8x128xi32>
    %cst_11 = arith.constant 1.200000e+01 : f32
    %20 = vector.broadcast %cst_11 : f32 to vector<8x128xf32>
    %21 = arith.subf %17, %20 : vector<8x128xf32>
    %22 = arith.select %19, %21, %17 : vector<8x128xi1>, vector<8x128xf32>
    %c0_12 = arith.constant 0 : index
    %c0_13 = arith.constant 0 : index
    %23 = vector.load %arg7[%c0_12, %c0_13] : memref<8x128xf32, #tpu.memory_space<vmem>>, vector<8x128xf32>
    tpu.vector_store %arg7[%c0_12, %c0_13], %22 {strides = array<i32>} : memref<8x128xf32, #tpu.memory_space<vmem>>, vector<8x128xf32>,
    %c0_14 = arith.constant 0 : index
    %c0_15 = arith.constant 0 : index
    %24 = vector.load %arg8[%c0_14, %c0_15] : memref<8x128xf32, #tpu.memory_space<vmem>>, vector<8x128xf32>
    tpu.vector_store %arg8[%c0_14, %c0_15], %10 {strides = array<i32>} : memref<8x128xf32, #tpu.memory_space<vmem>>, vector<8x128xf32>,
    return
  }
  func.func @transform_0(%arg0: i32, %arg1: i32) -> (i32, i32) {
    %c0_i32 = arith.constant 0 : i32
    %c0_i32_0 = arith.constant 0 : i32
    return %arg1, %c0_i32 : i32, i32
  }
  func.func @transform_1(%arg0: i32, %arg1: i32) -> (i32, i32) {
    %c0_i32 = arith.constant 0 : i32
    %c0_i32_0 = arith.constant 0 : i32
    return %arg1, %c0_i32 : i32, i32
  }
  func.func @transform_2(%arg0: i32, %arg1: i32) -> (i32, i32) {
    %c0_i32 = arith.constant 0 : i32
    %c0_i32_0 = arith.constant 0 : i32
    return %arg0, %c0_i32 : i32, i32
  }
  func.func @transform_3(%arg0: i32, %arg1: i32) -> (i32, i32) {
    %c0_i32 = arith.constant 0 : i32
    %c0_i32_0 = arith.constant 0 : i32
    return %c0_i32, %arg0 : i32, i32
  }
  func.func @transform_4(%arg0: i32, %arg1: i32) -> (i32, i32) {
    %c0_i32 = arith.constant 0 : i32
    %c0_i32_0 = arith.constant 0 : i32
    return %arg1, %c0_i32 : i32, i32
  }
  func.func @transform_5(%arg0: i32, %arg1: i32) -> (i32, i32) {
    %c0_i32 = arith.constant 0 : i32
    return %arg1, %arg0 : i32, i32
  }
  func.func @transform_6(%arg0: i32, %arg1: i32) -> (i32, i32) {
    %c0_i32 = arith.constant 0 : i32
    return %arg1, %arg0 : i32, i32
  }
}

</mosaic_0001>

<llo_original>
// kernel: tpu_custom_call.1
$region0: #{tpu_custom_call.1}
  #allocation0 [shape = 'u32[]', space=smem, size = 0x4, offset = 0x4, fixed_abs, tag = 'smem constant byte address 0x4 - core index']
  #allocation1 [shape = 'u32[144,128]{1,0:T(1,128)}', space=vmem, size = 0x12000, scoped, tag = 'internal scratch']
  %s0 = inlined_call_operand.vmem [shape: f32[8,32], index: 0, kind: input, shape index: {}]
  %s1 = inlined_call_operand.vmem [shape: f32[8,1], index: 1, kind: input, shape index: {}]
  %s2 = inlined_call_operand.vmem [shape: f32[128,32], index: 2, kind: input, shape index: {}]
  %s3 = inlined_call_operand.vmem [shape: f32[1,128], index: 3, kind: input, shape index: {}]
  %s4 = inlined_call_operand.vmem [shape: s32[8,1], index: 4, kind: input, shape index: {}]
  %s5 = inlined_call_operand.hbm [shape: f32[8,128], index: 5, kind: output, shape index: {0}]
  %s6 = inlined_call_operand.hbm [shape: f32[8,128], index: 6, kind: output, shape index: {1}]
  %7 = xla_tuple %s5, %s6
  %s8 = sld [smem:[#allocation0]]
  $region38: #{tpu_custom_call.1} parent=0
    _
  %s10 = ssub.s32 1, %s8
  %s11 = scalar_select 0, %s10, %s8
  $region1: #{tpu_custom_call.1} parent=0
    #allocation2 [shape = 'u8[4096]{0}', space=vmem, size = 0x1000, scoped, tag = 'output window, operand 0, single buffered']
    #allocation3 [shape = 's32[1]{0}', space=sflag, size = 0x4, scoped, tag = 'scoped memory for tpu_custom_call.1']
    #allocation4 [shape = 'u8[4096]{0}', space=vmem, size = 0x1000, scoped, tag = 'output window, operand 1, single buffered']
    #allocation5 [shape = 's32[1]{0}', space=sflag, size = 0x4, scoped, tag = 'scoped memory for tpu_custom_call.1']
    %12 = vsyncpa [#allocation3], 0
    %13 = vsyncpa [#allocation5], 0
    // Predicated region
    $region2: #{tpu_custom_call.1} parent=1 // pred_check
      _
    $region3: #{tpu_custom_call.1} parent=1 // pred_check_branch
      %15 = sbr.rel (0) target = $region5
    $region4: #{tpu_custom_call.1} parent=1 // pred_region
      _
    $region5: #{tpu_custom_call.1} parent=1 // pred_fallthru
      _
    // Predicated region
    $region6: #{tpu_custom_call.1} parent=1 // pred_check
      _
    $region7: #{tpu_custom_call.1} parent=1 // pred_check_branch
      %17 = sbr.rel (0) target = $region9
    $region8: #{tpu_custom_call.1} parent=1 // pred_region
      _
    $region9: #{tpu_custom_call.1} parent=1 // pred_fallthru
      _
    // Predicated region
    $region10: #{tpu_custom_call.1} parent=1 // pred_check
      _
    $region11: #{tpu_custom_call.1} parent=1 // pred_check_branch
      %19 = sbr.rel (0) target = $region13
    $region12: #{tpu_custom_call.1} parent=1 // pred_region
      _
    $region13: #{tpu_custom_call.1} parent=1 // pred_fallthru
      _
    // Predicated region
    $region14: #{tpu_custom_call.1} parent=1 // pred_check
      _
    $region15: #{tpu_custom_call.1} parent=1 // pred_check_branch
      %21 = sbr.rel (0) target = $region17
    $region16: #{tpu_custom_call.1} parent=1 // pred_region
      _
    $region17: #{tpu_custom_call.1} parent=1 // pred_fallthru
      _
    // Predicated region
    $region18: #{tpu_custom_call.1} parent=1 // pred_check
      _
    $region19: #{tpu_custom_call.1} parent=1 // pred_check_branch
      %23 = sbr.rel (0) target = $region21
    $region20: #{tpu_custom_call.1} parent=1 // pred_region
      _
    $region21: #{tpu_custom_call.1} parent=1 // pred_fallthru
      _
    %v24 = vld [vmem:[%s0] sm:$0xff]
    %v25 = vld [vmem:[%s2] sm:$0xff]
    %v26 = vld [vmem:[%s2 + $0x8] sm:$0xff]
    %v27 = vld [vmem:[%s2 + $0x10] sm:$0xff]
    %v28 = vld [vmem:[%s2 + $0x18] sm:$0xff]
    %v29 = vld [vmem:[%s2 + $0x20] sm:$0xff]
    %v30 = vld [vmem:[%s2 + $0x28] sm:$0xff]
    %v31 = vld [vmem:[%s2 + $0x30] sm:$0xff]
    %v32 = vld [vmem:[%s2 + $0x38] sm:$0xff]
    %v33 = vld [vmem:[%s2 + $0x40] sm:$0xff]
    %v34 = vld [vmem:[%s2 + $0x48] sm:$0xff]
    %v35 = vld [vmem:[%s2 + $0x50] sm:$0xff]
    %v36 = vld [vmem:[%s2 + $0x58] sm:$0xff]
    %v37 = vld [vmem:[%s2 + $0x60] sm:$0xff]
    %v38 = vld [vmem:[%s2 + $0x68] sm:$0xff]
    %v39 = vld [vmem:[%s2 + $0x70] sm:$0xff]
    %v40 = vld [vmem:[%s2 + $0x78] sm:$0xff]
    %v41 = vld [vmem:[%s1] sm:$0xff]
    %v42 = vld [vmem:[%s3] sm:$0x1]
    %vm43 = vcmask 261120
    %v45 = vsel %vm43, %v24, 0
    %v48 = vsel %vm43, %v25, 0
    %v51 = vsel %vm43, %v26, 0
    %v54 = vsel %vm43, %v27, 0
    %v57 = vsel %vm43, %v28, 0
    %v60 = vsel %vm43, %v29, 0
    %v63 = vsel %vm43, %v30, 0
    %v66 = vsel %vm43, %v31, 0
    %v69 = vsel %vm43, %v32, 0
    %v72 = vsel %vm43, %v33, 0
    %v75 = vsel %vm43, %v34, 0
    %v78 = vsel %vm43, %v35, 0
    %v81 = vsel %vm43, %v36, 0
    %v84 = vsel %vm43, %v37, 0
    %v87 = vsel %vm43, %v38, 0
    %v90 = vsel %vm43, %v39, 0
    %v93 = vsel %vm43, %v40, 0
    %95 = vmatprep.subr.mxu0 0.0
    %96 = vmatpush1.xpose.msra.mxu0 %v48
    %97 = vmatprep.subr.mxu0 0.0
    %98 = vmatpush1.xpose.msra.mxu0 %v51
    %99 = vmatprep.subr.mxu0 0.0
    %100 = vmatpush1.xpose.msra.mxu0 %v54
    %101 = vmatprep.subr.mxu0 0.0
    %102 = vmatpush1.xpose.msra.mxu0 %v57
    %103 = vmatprep.subr.mxu0 0.0
    %104 = vmatpush1.xpose.msra.mxu0 %v60
    %105 = vmatprep.subr.mxu0 0.0
    %106 = vmatpush1.xpose.msra.mxu0 %v63
    %107 = vmatprep.subr.mxu0 0.0
    %108 = vmatpush1.xpose.msra.mxu0 %v66
    %109 = vmatprep.subr.mxu0 0.0
    %110 = vmatpush1.xpose.msra.mxu0 %v69
    %111 = vmatprep.subr.mxu0 0.0
    %112 = vmatpush1.xpose.msra.mxu0 %v72
    %113 = vmatprep.subr.mxu0 0.0
    %114 = vmatpush1.xpose.msra.mxu0 %v75
    %115 = vmatprep.subr.mxu0 0.0
    %116 = vmatpush1.xpose.msra.mxu0 %v78
    %117 = vmatprep.subr.mxu0 0.0
    %118 = vmatpush1.xpose.msra.mxu0 %v81
    %119 = vmatprep.subr.mxu0 0.0
    %120 = vmatpush1.xpose.msra.mxu0 %v84
    %121 = vmatprep.subr.mxu0 0.0
    %122 = vmatpush1.xpose.msra.mxu0 %v87
    %123 = vmatprep.subr.mxu0 0.0
    %124 = vmatpush1.xpose.msra.mxu0 %v90
    %125 = vmatprep.subr.mxu0 0.0
    %126 = vmatpush1.xpose.msra.mxu0 %v93
    %127 = vmatprep.subr.mxu0 0.0
    %128 = vmatpush1.xpose.msra.mxu0 0.0
    %129 = vmatprep.subr.mxu0 0.0
    %130 = vmatpush1.xpose.msra.mxu0 0.0
    %131 = vmatprep.subr.mxu0 0.0
    %132 = vmatpush1.xpose.msra.mxu0 0.0
    %133 = vmatprep.subr.mxu0 0.0
    %134 = vmatpush1.xpose.msra.mxu0 0.0
    %135 = vmatprep.subr.mxu0 0.0
    %136 = vmatpush1.xpose.msra.mxu0 0.0
    %137 = vmatprep.subr.mxu0 0.0
    %138 = vmatpush1.xpose.msra.mxu0 0.0
    %139 = vmatprep.subr.mxu0 0.0
    %140 = vmatpush1.xpose.msra.mxu0 0.0
    %141 = vmatprep.subr.mxu0 0.0
    %142 = vmatpush1.xpose.msra.mxu0 0.0
    %143 = vmatprep.subr.mxu0 0.0
    %144 = vmatpush1.xpose.msra.mxu0 0.0
    %145 = vmatprep.subr.mxu0 0.0
    %146 = vmatpush1.xpose.msra.mxu0 0.0
    %147 = vmatprep.subr.mxu0 0.0
    %148 = vmatpush1.xpose.msra.mxu0 0.0
    %149 = vmatprep.subr.mxu0 0.0
    %150 = vmatpush1.xpose.msra.mxu0 0.0
    %151 = vmatprep.subr.mxu0 0.0
    %152 = vmatpush1.xpose.msra.mxu0 0.0
    %153 = vmatprep.subr.mxu0 0.0
    %154 = vmatpush1.xpose.msra.mxu0 0.0
    %155 = vmatprep.subr.mxu0 0.0
    %156 = vmatpush1.xpose.msra.mxu0 0.0
    %157 = vmatprep.subr.mxu0 0.0
    %158 = vmatpush1.xpose.msra.mxu0 0.0
    %159 = vmatprep.mubr.f32.mxu0 0.0
    %160 = vmatmul.mubr.f32.gmra.mrb[0].mxu0 %v45
    %v161 = vpop.f32.mrb[0].mxu0
    %v162 = vadd.f32 0.0, %v161
    %v163 = vpop.f32.mrb[0].mxu0
    %164 = vdwg.mxu0
    %166 = vset.pattern.permute.xlu0 0
    %167 = vperm.xlu0 %166, %v41
    %v168 = vpop.permute.xlu0 %167
    %v171 = vlaneseq
    %v172 = vshrl.u32 %v171, 7
    %v173 = vsub.s32 0, %v172
    %v174 = vrot.slane %v42, %v173
    %v176 = vmul.f32 %v168, %v174
    %v177 = vmax.f32 %v176, 1e-08
    %v178 = vrcp.pop %v177
    %v179 = vmul.f32 %v162, %v178
    %v180 = vld [vmem:[%s4] sm:$0xff]
    %s181 = smul.u32 0, 128
    %v182 = vstv %s181
    %v183 = vsub.s32 %v180, %v182
    %v184 = vlaneseq
    %v185 = vand.u32 %v184, 127
    %v186 = vmul.f32 %v179, 30.0
    %187 = vset.pattern.permute.xlu0 0
    %188 = vperm.xlu0 %187, %v183
    %v189 = vpop.permute.xlu0 %188
    %vm190 = vcmp.eq.s32.totalorder %v185, %v189
    %v191 = vsub.f32 %v186, 12.0
    %v192 = vsel %vm190, %v191, %v186
    %193 = vst [vmem:[#allocation2] sm:$0xff] %v192
    %194 = vst [vmem:[#allocation4] sm:$0xff] %v179
    // Predicated region
    $region22: #{tpu_custom_call.1} parent=1 // pred_check
      _
    $region23: #{tpu_custom_call.1} parent=1 // pred_check_branch
      %196 = sbr.rel (0) target = $region25
    $region24: #{tpu_custom_call.1} parent=1 // pred_region
      %s198 = ssub.s32 128, 128
      %199 = vsyncadd [#allocation3], %s198
      %s201 = sshll.u32 [#allocation2], 4
      %s202 = int_to_ptr.vmem [resolvable:$true] %s201
      %204 = dma.vmem_to_hbm [thread:$0]  %s202, 128, %s5, [#allocation3]
    $region25: #{tpu_custom_call.1} parent=1 // pred_fallthru
      _
    // Predicated region
    $region26: #{tpu_custom_call.1} parent=1 // pred_check
      _
    $region27: #{tpu_custom_call.1} parent=1 // pred_check_branch
      %206 = sbr.rel (0) target = $region29
    $region28: #{tpu_custom_call.1} parent=1 // pred_region
      %s208 = ssub.s32 128, 128
      %209 = vsyncadd [#allocation5], %s208
      %s211 = sshll.u32 [#allocation4], 4
      %s212 = int_to_ptr.vmem [resolvable:$true] %s211
      %214 = dma.vmem_to_hbm [thread:$0]  %s212, 128, %s6, [#allocation5]
    $region29: #{tpu_custom_call.1} parent=1 // pred_fallthru
      _
    // Predicated region
    $region30: #{tpu_custom_call.1} parent=1 // pred_check
      _
    $region31: #{tpu_custom_call.1} parent=1 // pred_check_branch
      %216 = sbr.rel (0) target = $region33
    $region32: #{tpu_custom_call.1} parent=1 // pred_region
      %217 = dma.done [#allocation3], 128
    $region33: #{tpu_custom_call.1} parent=1 // pred_fallthru
      _
    // Predicated region
    $region34: #{tpu_custom_call.1} parent=1 // pred_check
      _
    $region35: #{tpu_custom_call.1} parent=1 // pred_check_branch
      %219 = sbr.rel (0) target = $region37
    $region36: #{tpu_custom_call.1} parent=1 // pred_region
      %220 = dma.done [#allocation5], 128
    $region37: #{tpu_custom_call.1} parent=1 // pred_fallthru
      _
    %221 = vsyncpa [#allocation3], 1
    %222 = vsyncpa [#allocation5], 1

</llo_original>
